<compile_context>
chip_gen: v7x
topology: tpu7x:2x2x1
jax: 0.10.0
libtpu: 0.0.40
codegen_flags: <defaults>
</compile_context>

<pallas_src>
import math
import functools

import jax
import jax.numpy as jnp
from jax.experimental import pallas as pl
from jax.experimental.pallas import tpu as pltpu


def _round_up(x, m):
    return (x + m - 1) // m * m


# ---------------------------------------------------------------------------
# Kernels
# ---------------------------------------------------------------------------

def _linear_kernel_f32_out(x_ref, w_ref, b_ref, o_ref):
    """f32 output: the resident output tile doubles as the accumulator."""
    @pl.when(pl.program_id(2) == 0)
    def _():
        # Fold bias into the accumulator init (removes the epilogue add).
        o_ref[...] = jnp.broadcast_to(b_ref[...].astype(o_ref.dtype), o_ref.shape)

    o_ref[...] += jnp.dot(
        x_ref[...], w_ref[...], preferred_element_type=jnp.float32
    )


def _linear_kernel_acc(x_ref, w_ref, b_ref, o_ref, acc_ref):
    """Low-precision output: accumulate in f32 scratch, cast at the last k."""
    k = pl.program_id(2)

    @pl.when(k == 0)
    def _():
        acc_ref[...] = jnp.broadcast_to(
            b_ref[...].astype(jnp.float32), acc_ref.shape
        )

    acc_ref[...] += jnp.dot(
        x_ref[...], w_ref[...], preferred_element_type=jnp.float32
    )

    @pl.when(k == pl.num_programs(2) - 1)
    def _():
        o_ref[...] = acc_ref[...].astype(o_ref.dtype)


# ---------------------------------------------------------------------------
# Tile / VMEM sizing helpers
# ---------------------------------------------------------------------------

def _vmem_capacity_bytes():
    try:
        info = pltpu.get_tpu_info()
        cap = int(getattr(info, "vmem_capacity_bytes", 0) or 0)
        if cap > 0:
            return cap
    except Exception:
        pass
    # Conservative fallback: v7x has the smallest per-TensorCore VMEM (64 MiB).
    return 64 * 1024 * 1024


def _fit_tiles(tm, tn, tk, budget_bytes, bx, bw, bo, sub_m):
    """Shrink tiles until the double-buffered VMEM footprint fits the budget."""

    def footprint(tm_, tn_, tk_):
        return (2 * tm_ * tk_ * bx        # x tiles (double-buffered)
                + 2 * tk_ * tn_ * bw      # weight tiles
                + 2 * tm_ * tn_ * bo      # output tiles
                + tm_ * tn_ * 4)          # (possible) f32 accumulator

    while footprint(tm, tn, tk) > budget_bytes:
        if tk >= max(tm, tn) and tk >= 256:
            tk = _round_up(tk // 2, 128)
        elif tn >= tm and tn >= 256:
            tn = _round_up(tn // 2, 128)
        elif tm >= 2 * sub_m:
            tm = _round_up(tm // 2, sub_m)
        else:
            break
    return tm, tn, tk


# ---------------------------------------------------------------------------
# Wrapper
# ---------------------------------------------------------------------------

def prepare_ds_linear_weight(weight):
    """One-time relayout of a PyTorch-style (out, in) weight to (in, out).

    Do this at parameter-prep time and call ds_linear(..., weight_layout="io")
    to hoist the full-weight HBM relayout out of every forward call.
    """
    return jnp.asarray(weight).T


@functools.partial(
    jax.jit,
    static_argnames=("block_m", "block_n", "block_k", "compute_dtype",
                     "weight_layout"),
)
def ds_linear(x, weight, bias=None, *, block_m=512, block_n=1024, block_k=2048,
              compute_dtype=None, weight_layout="oi"):
    """Pallas implementation of F.linear(x, weight, bias) = x @ weight.T + bias.

    weight_layout:
      "oi": weight is (out_features, in_features)  (PyTorch layout)
      "io": weight is (in_features, out_features)  (pre-transposed, hot path)
    compute_dtype: optional MXU dtype for x/weight (e.g. jnp.bfloat16);
      accumulation and bias add stay f32, output keeps x.dtype.
    """
    *lead, in_features = x.shape
    if weight_layout == "oi":
        out_features = weight.shape[0]
        w_io = weight.T          # per-call relayout; prefer "io" + prepare_ds_linear_weight
    elif weight_layout == "io":
        out_features = weight.shape[1]
        w_io = weight
    else:
        raise ValueError(f"unknown weight_layout: {weight_layout!r}")

    if bias is None:
        bias = jnp.zeros((out_features,), dtype=jnp.float32)

    out_dtype = x.dtype
    cdt = jnp.dtype(compute_dtype) if compute_dtype is not None else jnp.dtype(x.dtype)

    x2d = x.reshape(-1, in_features)
    m = x2d.shape[0]

    bx = cdt.itemsize
    bw = cdt.itemsize
    bo = jnp.dtype(out_dtype).itemsize
    bb = jnp.dtype(bias.dtype).itemsize
    # dtype-aware sublane multiple: 8 (f32), 16 (bf16), 32 (int8/fp8)
    sub_m = max(8, 32 // max(bx, 1))

    # MXU-friendly tiles clamped to the (minimally padded) problem dims, then
    # shrunk to a generation-specific VMEM budget.
    tm = min(block_m, _round_up(m, sub_m))
    tn = min(block_n, _round_up(out_features, 128))
    tk = min(block_k, _round_up(in_features, 128))

    vmem_cap = _vmem_capacity_bytes()
    budget = min(int(vmem_cap * 0.7), 96 * 1024 * 1024)
    tm, tn, tk = _fit_tiles(tm, tn, tk, budget, bx, bw, bo, sub_m)

    m_pad = _round_up(m, tm)
    n_pad = _round_up(out_features, tn)
    k_pad = _round_up(in_features, tk)

    # Megacore (v7x has 2 TensorCores): if both parallel grid axes collapsed to
    # one block, split N so each core streams a disjoint half of the weight.
    if (m_pad // tm == 1 and n_pad // tn == 1
            and tn >= 256 and (tn // 2) % 128 == 0):
        tn //= 2
        n_pad = _round_up(out_features, tn)

    # Wrapper-side layout plumbing (zero K-padding is exact for the dot;
    # padded M rows / N cols are sliced off below).
    x_p = jnp.pad(x2d, ((0, m_pad - m), (0, k_pad - in_features))).astype(cdt)
    w_p = jnp.pad(
        w_io, ((0, k_pad - in_features), (0, n_pad - out_features))
    ).astype(cdt)
    b_p = jnp.pad(bias, (0, n_pad - out_features)).reshape(1, n_pad)

    grid = (m_pad // tm, n_pad // tn, k_pad // tk)
    grid_m, grid_n, _ = grid

    out_is_f32 = jnp.dtype(out_dtype) == jnp.dtype(jnp.float32)
    if out_is_f32:
        kernel = _linear_kernel_f32_out
        scratch_shapes = []
        acc_bytes = 0
    else:
        kernel = _linear_kernel_acc
        scratch_shapes = [pltpu.VMEM((tm, tn), jnp.float32)]
        acc_bytes = tm * tn * 4

    # Explicit VMEM limit so the compiler allows the large tiles (default
    # scoped limit is only 16/32 MiB), with headroom, capped at physical VMEM.
    needed = (2 * tm * tk * bx + 2 * tk * tn * bw + 2 * tm * tn * bo
              + acc_bytes + 2 * tn * bb)
    vmem_limit = int(min(
        max(needed + max(needed // 4, 8 * 1024 * 1024), 32 * 1024 * 1024),
        vmem_cap,
    ))

    # Grid-aware traffic: weight panel streamed once per M block, x panel once
    # per N block, bias per M block, output written once.
    cost = pl.CostEstimate(
        flops=2 * m_pad * n_pad * k_pad,
        transcendentals=0,
        bytes_accessed=int(
            m_pad * k_pad * bx * grid_n
            + k_pad * n_pad * bw * grid_m
            + n_pad * bb * grid_m
            + m_pad * n_pad * bo
        ),
    )

    out_p = pl.pallas_call(
        kernel,
        out_shape=jax.ShapeDtypeStruct((m_pad, n_pad), out_dtype),
        grid_spec=pltpu.PrefetchScalarGridSpec(
            num_scalar_prefetch=0,
            grid=grid,
            in_specs=[
                pl.BlockSpec((tm, tk), lambda i, j, k: (i, k)),   # x tile
                pl.BlockSpec((tk, tn), lambda i, j, k: (k, j)),   # (K,N) weight tile
                pl.BlockSpec((1, tn), lambda i, j, k: (0, j)),    # bias tile
            ],
            out_specs=pl.BlockSpec((tm, tn), lambda i, j, k: (i, j)),
            scratch_shapes=scratch_shapes,
        ),
        compiler_params=pltpu.CompilerParams(
            dimension_semantics=("parallel", "parallel", "arbitrary"),
            vmem_limit_bytes=vmem_limit,
        ),
        cost_estimate=cost,
    )(x_p, w_p, b_p)

    out2d = out_p[:m, :out_features]
    return out2d.reshape(*lead, out_features)


def init_ds_linear_params(key, in_features, out_features, dtype=jnp.float32):
    """Deterministic init mirroring DSLinear.init_params shapes/bounds."""
    kw, kb = jax.random.split(key)
    fan_in = in_features
    bound = 1.0 / math.sqrt(fan_in)
    weight = jax.random.uniform(
        kw, (out_features, in_features), dtype, minval=-bound, maxval=bound
    )
    bias = jax.random.uniform(
        kb, (out_features,), dtype, minval=-bound, maxval=bound
    )
    return weight, bias


if __name__ == "__main__":
    key = jax.random.PRNGKey(0)
    k_x, k_p, k_x2, k_p2 = jax.random.split(key, 4)

    batch, seq, in_features, out_features = 2, 8, 32, 16
    x = jax.random.normal(k_x, (batch, seq, in_features), dtype=jnp.float32)
    weight, bias = init_ds_linear_params(k_p, in_features, out_features)
    ref = x @ weight.T + bias

    # 1) default f32 path (exact).
    out = ds_linear(x, weight, bias)
    jax.block_until_ready(out)
    assert out.shape == (batch, seq, out_features)
    assert jnp.allclose(out, ref, atol=1e-5, rtol=1e-5)

    # 2) pre-transposed ("io") weight path — relayout hoisted out of forward.
    w_io = prepare_ds_linear_weight(weight)
    out_io = ds_linear(x, w_io, bias, weight_layout="io")
    assert jnp.allclose(out_io, ref, atol=1e-5, rtol=1e-5)

    # 3) non-tile-aligned shapes + small explicit tiles: exercises multi-block
    #    grid, K accumulation and M/N/K padding.
    m2, k2, n2 = 200, 300, 272
    x2 = jax.random.normal(k_x2, (m2, k2), dtype=jnp.float32)
    w2, b2 = init_ds_linear_params(k_p2, k2, n2)
    out2 = ds_linear(x2, w2, b2, block_m=64, block_n=128, block_k=128)
    ref2 = x2 @ w2.T + b2
    assert jnp.allclose(out2, ref2, atol=1e-4, rtol=1e-4)

    # 4) bf16 MXU compute path (f32 accumulation, f32 output).
    out_bf = ds_linear(x, weight, bias, compute_dtype=jnp.bfloat16)
    assert out_bf.dtype == jnp.float32
    assert jnp.allclose(out_bf, ref, atol=5e-2, rtol=5e-2)

    # 5) bf16 inputs/outputs: exercises the f32-scratch accumulator kernel.
    out_b16 = ds_linear(
        x.astype(jnp.bfloat16), weight.astype(jnp.bfloat16),
        bias.astype(jnp.bfloat16),
    )
    assert out_b16.dtype == jnp.bfloat16
    assert jnp.allclose(out_b16.astype(jnp.float32), ref, atol=5e-2, rtol=5e-2)

    jax.block_until_ready((out, out_io, out2, out_bf, out_b16))
    print("KERNEL_OK")
</pallas_src>

<mosaic_0001>
module attributes {stable_mosaic.version = 11 : i64} {
  func.func @_linear_kernel_f32_out(%arg0: i32, %arg1: i32, %arg2: i32, %arg3: memref<16x128xf32, #tpu.memory_space<vmem>>, %arg4: memref<128x128xf32, #tpu.memory_space<vmem>>, %arg5: memref<1x128xf32, #tpu.memory_space<vmem>>, %arg6: memref<16x128xf32, #tpu.memory_space<vmem>>) attributes {dimension_semantics = [#tpu.dimension_semantics<parallel>, #tpu.dimension_semantics<parallel>, #tpu.dimension_semantics<arbitrary>], iteration_bounds = array<i64: 1, 1, 1>, scalar_prefetch = 0 : i64, scratch_operands = 0 : i64, tpu.core_type = #tpu.core_type<tc>, window_params = [{transform_indices = @transform_0, window_bounds = array<i64: 16, 128>}, {transform_indices = @transform_1, window_bounds = array<i64: 128, 128>}, {transform_indices = @transform_2, window_bounds = array<i64: 1, 128>}, {transform_indices = @transform_3, window_bounds = array<i64: 16, 128>}]} {
    %c0_i32 = arith.constant 0 : i32
    %0 = arith.cmpi eq, %arg2, %c0_i32 : i32
    %1 = arith.extui %0 : i1 to i32
    %c0_i32_0 = arith.constant 0 : i32
    %2 = arith.cmpi ne, %1, %c0_i32_0 : i32
    scf.if %2 {
      %c0_8 = arith.constant 0 : index
      %c0_9 = arith.constant 0 : index
      %9 = vector.load %arg5[%c0_8, %c0_9] : memref<1x128xf32, #tpu.memory_space<vmem>>, vector<1x128xf32>
      %10 = vector.shape_cast %9 : vector<1x128xf32> to vector<1x128xf32>
      %11 = vector.broadcast %10 : vector<1x128xf32> to vector<16x128xf32>
      %c0_10 = arith.constant 0 : index
      %c0_11 = arith.constant 0 : index
      %12 = vector.load %arg6[%c0_10, %c0_11] : memref<16x128xf32, #tpu.memory_space<vmem>>, vector<16x128xf32>
      tpu.vector_store %arg6[%c0_10, %c0_11], %11 {strides = array<i32>} : memref<16x128xf32, #tpu.memory_space<vmem>>, vector<16x128xf32>,
    } else {
    }
    %c0 = arith.constant 0 : index
    %c0_1 = arith.constant 0 : index
    %3 = vector.load %arg6[%c0, %c0_1] : memref<16x128xf32, #tpu.memory_space<vmem>>, vector<16x128xf32>
    %c0_2 = arith.constant 0 : index
    %c0_3 = arith.constant 0 : index
    %4 = vector.load %arg3[%c0_2, %c0_3] : memref<16x128xf32, #tpu.memory_space<vmem>>, vector<16x128xf32>
    %c0_4 = arith.constant 0 : index
    %c0_5 = arith.constant 0 : index
    %5 = vector.load %arg4[%c0_4, %c0_5] : memref<128x128xf32, #tpu.memory_space<vmem>>, vector<128x128xf32>
    %cst = arith.constant dense<0.000000e+00> : vector<16x128xf32>
    %6 = tpu.matmul %4, %5, %cst {dimension_numbers = #tpu.dot_dimension_numbers<[1], [0], [0], [1], [0, 0, 1, 1], [], []>} : vector<16x128xf32>, vector<128x128xf32>, vector<16x128xf32> -> vector<16x128xf32>
    %7 = arith.addf %3, %6 : vector<16x128xf32>
    %c0_6 = arith.constant 0 : index
    %c0_7 = arith.constant 0 : index
    %8 = vector.load %arg6[%c0_6, %c0_7] : memref<16x128xf32, #tpu.memory_space<vmem>>, vector<16x128xf32>
    tpu.vector_store %arg6[%c0_6, %c0_7], %7 {strides = array<i32>} : memref<16x128xf32, #tpu.memory_space<vmem>>, vector<16x128xf32>,
    return
  }
  func.func @transform_0(%arg0: i32, %arg1: i32, %arg2: i32) -> (i32, i32) {
    %c0_i32 = arith.constant 0 : i32
    return %arg0, %arg2 : i32, i32
  }
  func.func @transform_1(%arg0: i32, %arg1: i32, %arg2: i32) -> (i32, i32) {
    %c0_i32 = arith.constant 0 : i32
    return %arg2, %arg1 : i32, i32
  }
  func.func @transform_2(%arg0: i32, %arg1: i32, %arg2: i32) -> (i32, i32) {
    %c0_i32 = arith.constant 0 : i32
    %c0_i32_0 = arith.constant 0 : i32
    return %c0_i32, %arg1 : i32, i32
  }
  func.func @transform_3(%arg0: i32, %arg1: i32, %arg2: i32) -> (i32, i32) {
    %c0_i32 = arith.constant 0 : i32
    return %arg0, %arg1 : i32, i32
  }
}

</mosaic_0001>

<llo_original>
// kernel: ds_linear.1
$region0: #{ds_linear.1}
  #allocation0 [shape = 'u32[]', space=smem, size = 0x4, offset = 0x4, fixed_abs, tag = 'smem constant byte address 0x4 - core index']
  #allocation1 [shape = 'u32[144,128]{1,0:T(1,128)}', space=vmem, size = 0x12000, scoped, tag = 'internal scratch']
  %s0 = inlined_call_operand.vmem [shape: f32[16,128], index: 0, kind: input, shape index: {}]
  %s1 = inlined_call_operand.vmem [shape: f32[128,128], index: 1, kind: input, shape index: {}]
  %s2 = inlined_call_operand.vmem [shape: f32[1,128], index: 2, kind: input, shape index: {}]
  %s3 = inlined_call_operand.vmem [shape: f32[16,128], index: 3, kind: output, shape index: {}]
  %s4 = sld [smem:[#allocation0]]
  $region26: #{ds_linear.1} parent=0
    _
  %s6 = ssub.s32 1, %s4
  %s7 = scalar_select 0, %s6, %s4
  // Predicated region
  $region2: #{ds_linear.1} parent=0 // pred_check
    _
  $region3: #{ds_linear.1} parent=0 // pred_check_branch
    %9 = sbr.rel (0) target = $region5
  $region4: #{ds_linear.1} parent=0 // pred_region
    _
  $region5: #{ds_linear.1} parent=0 // pred_fallthru
    _
  // Predicated region
  $region6: #{ds_linear.1} parent=0 // pred_check
    _
  $region7: #{ds_linear.1} parent=0 // pred_check_branch
    %11 = sbr.rel (0) target = $region9
  $region8: #{ds_linear.1} parent=0 // pred_region
    _
  $region9: #{ds_linear.1} parent=0 // pred_fallthru
    _
  // Predicated region
  $region10: #{ds_linear.1} parent=0 // pred_check
    _
  $region11: #{ds_linear.1} parent=0 // pred_check_branch
    %13 = sbr.rel (0) target = $region13
  $region12: #{ds_linear.1} parent=0 // pred_region
    _
  $region13: #{ds_linear.1} parent=0 // pred_fallthru
    _
  %p14 = scmp.eq.s32.totalorder 0, 0
  // Predicated region
  $region14: #{ds_linear.1} parent=0 // pred_check
    %p15 = pneg %p14
  $region15: #{ds_linear.1} parent=0 // pred_check_branch
    %17 = sbr.rel (%p15) target = $region17
  $region16: #{ds_linear.1} parent=0 // pred_region
    %v18 = vld [vmem:[%s2] sm:$0x1]
    %v20 = vlaneseq
    %v21 = vshrl.u32 %v20, 7
    %v22 = vsub.s32 0, %v21
    %v23 = vrot.slane %v18, %v22
    %25 = vst [vmem:[%s3] sm:$0xff] %v23
    %26 = vst [vmem:[%s3 + $0x8] sm:$0xff] %v23
  $region17: #{ds_linear.1} parent=0 // pred_fallthru
    _
  %v27 = vld [vmem:[%s3] sm:$0xff]
  %v28 = vld [vmem:[%s3 + $0x8] sm:$0xff]
  %v29 = vld [vmem:[%s0] sm:$0xff]
  %v30 = vld [vmem:[%s0 + $0x8] sm:$0xff]
  %v31 = vld [vmem:[%s1] sm:$0xff]
  %v32 = vld [vmem:[%s1 + $0x8] sm:$0xff]
  %v33 = vld [vmem:[%s1 + $0x10] sm:$0xff]
  %v34 = vld [vmem:[%s1 + $0x18] sm:$0xff]
  %v35 = vld [vmem:[%s1 + $0x20] sm:$0xff]
  %v36 = vld [vmem:[%s1 + $0x28] sm:$0xff]
  %v37 = vld [vmem:[%s1 + $0x30] sm:$0xff]
  %v38 = vld [vmem:[%s1 + $0x38] sm:$0xff]
  %v39 = vld [vmem:[%s1 + $0x40] sm:$0xff]
  %v40 = vld [vmem:[%s1 + $0x48] sm:$0xff]
  %v41 = vld [vmem:[%s1 + $0x50] sm:$0xff]
  %v42 = vld [vmem:[%s1 + $0x58] sm:$0xff]
  %v43 = vld [vmem:[%s1 + $0x60] sm:$0xff]
  %v44 = vld [vmem:[%s1 + $0x68] sm:$0xff]
  %v45 = vld [vmem:[%s1 + $0x70] sm:$0xff]
  %v46 = vld [vmem:[%s1 + $0x78] sm:$0xff]
  %47 = vmatprep.subr.mxu0 0.0
  %48 = vmatpush1.msra.mxu0 %v31
  %49 = vmatprep.subr.mxu0 0.0
  %50 = vmatpush1.msra.mxu0 %v32
  %51 = vmatprep.subr.mxu0 0.0
  %52 = vmatpush1.msra.mxu0 %v33
  %53 = vmatprep.subr.mxu0 0.0
  %54 = vmatpush1.msra.mxu0 %v34
  %55 = vmatprep.subr.mxu0 0.0
  %56 = vmatpush1.msra.mxu0 %v35
  %57 = vmatprep.subr.mxu0 0.0
  %58 = vmatpush1.msra.mxu0 %v36
  %59 = vmatprep.subr.mxu0 0.0
  %60 = vmatpush1.msra.mxu0 %v37
  %61 = vmatprep.subr.mxu0 0.0
  %62 = vmatpush1.msra.mxu0 %v38
  %63 = vmatprep.subr.mxu0 0.0
  %64 = vmatpush1.msra.mxu0 %v39
  %65 = vmatprep.subr.mxu0 0.0
  %66 = vmatpush1.msra.mxu0 %v40
  %67 = vmatprep.subr.mxu0 0.0
  %68 = vmatpush1.msra.mxu0 %v41
  %69 = vmatprep.subr.mxu0 0.0
  %70 = vmatpush1.msra.mxu0 %v42
  %71 = vmatprep.subr.mxu0 0.0
  %72 = vmatpush1.msra.mxu0 %v43
  %73 = vmatprep.subr.mxu0 0.0
  %74 = vmatpush1.msra.mxu0 %v44
  %75 = vmatprep.subr.mxu0 0.0
  %76 = vmatpush1.msra.mxu0 %v45
  %77 = vmatprep.subr.mxu0 0.0
  %78 = vmatpush1.msra.mxu0 %v46
  %79 = vmatprep.subr.mxu0 0.0
  %80 = vmatpush1.msra.mxu0 0.0
  %81 = vmatprep.subr.mxu0 0.0
  %82 = vmatpush1.msra.mxu0 0.0
  %83 = vmatprep.subr.mxu0 0.0
  %84 = vmatpush1.msra.mxu0 0.0
  %85 = vmatprep.subr.mxu0 0.0
  %86 = vmatpush1.msra.mxu0 0.0
  %87 = vmatprep.subr.mxu0 0.0
  %88 = vmatpush1.msra.mxu0 0.0
  %89 = vmatprep.subr.mxu0 0.0
  %90 = vmatpush1.msra.mxu0 0.0
  %91 = vmatprep.subr.mxu0 0.0
  %92 = vmatpush1.msra.mxu0 0.0
  %93 = vmatprep.subr.mxu0 0.0
  %94 = vmatpush1.msra.mxu0 0.0
  %95 = vmatprep.subr.mxu0 0.0
  %96 = vmatpush1.msra.mxu0 0.0
  %97 = vmatprep.subr.mxu0 0.0
  %98 = vmatpush1.msra.mxu0 0.0
  %99 = vmatprep.subr.mxu0 0.0
  %100 = vmatpush1.msra.mxu0 0.0
  %101 = vmatprep.subr.mxu0 0.0
  %102 = vmatpush1.msra.mxu0 0.0
  %103 = vmatprep.subr.mxu0 0.0
  %104 = vmatpush1.msra.mxu0 0.0
  %105 = vmatprep.subr.mxu0 0.0
  %106 = vmatpush1.msra.mxu0 0.0
  %107 = vmatprep.subr.mxu0 0.0
  %108 = vmatpush1.msra.mxu0 0.0
  %109 = vmatprep.subr.mxu0 0.0
  %110 = vmatpush1.msra.mxu0 0.0
  %111 = vmatprep.mubr.f32.mxu0 0.0
  %112 = vmatmul.mubr.f32.gmra.mrb[0].mxu0 %v29
  %v113 = vpop.f32.mrb[0].mxu0
  %v114 = vadd.f32 0.0, %v113
  %v115 = vpop.f32.mrb[0].mxu0
  %116 = vmatprep.mubr.f32.mxu0 0.0
  %117 = vmatmul.mubr.f32.gmra.mrb[0].mxu0 %v30
  %v118 = vpop.f32.mrb[0].mxu0
  %v119 = vadd.f32 0.0, %v118
  %v120 = vpop.f32.mrb[0].mxu0
  %121 = vdwg.mxu0
  %v122 = vadd.f32 %v27, %v114
  %v123 = vadd.f32 %v28, %v119
  %124 = vst [vmem:[%s3] sm:$0xff] %v122
  %125 = vst [vmem:[%s3 + $0x8] sm:$0xff] %v123
  // Predicated region
  $region18: #{ds_linear.1} parent=0 // pred_check
    _
  $region19: #{ds_linear.1} parent=0 // pred_check_branch
    %127 = sbr.rel (0) target = $region21
  $region20: #{ds_linear.1} parent=0 // pred_region
    _
  $region21: #{ds_linear.1} parent=0 // pred_fallthru
    _
  // Predicated region
  $region22: #{ds_linear.1} parent=0 // pred_check
    _
  $region23: #{ds_linear.1} parent=0 // pred_check_branch
    %129 = sbr.rel (0) target = $region25
  $region24: #{ds_linear.1} parent=0 // pred_region
    _
  $region25: #{ds_linear.1} parent=0 // pred_fallthru
    _

</llo_original>
